<compile_context>
chip_gen: v7x
topology: tpu7x:2x2x1
jax: 0.10.0
libtpu: 0.0.40
codegen_flags: <defaults>
</compile_context>

<pallas_src>
import functools

import jax
import jax.numpy as jnp
from jax import lax
from jax.experimental import pallas as pl
from jax.experimental.pallas import tpu as pltpu


def _focal_ce_kernel(logits_ref, target_ref, out_ref,
                     acc_ref, m_ref, l_ref, t_ref, *,
                     n_total, c_total, block_n, block_c, tiles_per_split):
    s = pl.program_id(0)            # split (megacore-parallel on v7x, serial elsewhere)
    i = pl.program_id(1)            # row tile within this split
    j = pl.program_id(2)            # class tile (online-logsumexp reduction axis)
    n_i = pl.num_programs(1)
    n_j = pl.num_programs(2)

    @pl.when(jnp.logical_and(i == 0, j == 0))
    def _init_split():
        acc_ref[...] = jnp.zeros_like(acc_ref)

    @pl.when(j == 0)
    def _init_row_tile():
        m_ref[...] = jnp.full_like(m_ref, -jnp.inf)
        l_ref[...] = jnp.zeros_like(l_ref)
        t_ref[...] = jnp.zeros_like(t_ref)

    x = logits_ref[...]             # (bn, bc) in the HBM dtype (bf16 stays bf16)
    tgt = target_ref[...]           # (bn, 1) int32
    bn, bc = x.shape

    col_ids = j * block_c + lax.broadcasted_iota(jnp.int32, (bn, bc), 1)
    if c_total % block_c != 0:
        # Last class tile reads past C: neutralize the padded columns.
        x = jnp.where(col_ids < c_total, x, jnp.asarray(-jnp.inf, dtype=x.dtype))

    # Target-logit gather fused as a masked sum over the RAW tile (exactly one
    # non-zero per row, so summing in the input dtype is exact).
    t_ref[...] += jnp.sum(jnp.where(col_ids == tgt, x, jnp.zeros_like(x)),
                          axis=-1, keepdims=True).astype(jnp.float32)

    # Online logsumexp update; f32 appears only inside the streamed exp/sum —
    # no full-tile f32 intermediate is materialized in VMEM.
    tile_max = jnp.max(x, axis=-1, keepdims=True).astype(jnp.float32)     # (bn, 1)
    m_old = m_ref[...]
    m_new = jnp.maximum(m_old, tile_max)
    tile_sumexp = jnp.sum(jnp.exp(x.astype(jnp.float32) - m_new),
                          axis=-1, keepdims=True)                         # (bn, 1)
    l_ref[...] = l_ref[...] * jnp.exp(m_old - m_new) + tile_sumexp
    m_ref[...] = m_new

    @pl.when(j == n_j - 1)
    def _finish_row_tile():
        per_row_ce = m_ref[...] + jnp.log(l_ref[...]) - t_ref[...]        # (bn, 1)
        row0 = (s * tiles_per_split + i) * block_n
        row_ids = row0 + lax.broadcasted_iota(jnp.int32, (bn, 1), 0)
        # Mask padded rows (partial last tile / clamped split-tail tile); the
        # select also stops any NaN from garbage rows propagating.
        per_row_ce = jnp.where(row_ids < n_total, per_row_ce, 0.0)
        acc_ref[...] += jnp.sum(per_row_ce, axis=0, keepdims=True)

    @pl.when(jnp.logical_and(i == n_i - 1, j == n_j - 1))
    def _finish_split():
        # Lane-dense (1, 8, 128) output block per split; wrapper reads [:, 0, 0].
        out_ref[...] = jnp.broadcast_to(acc_ref[...].reshape(1, 1, 1), out_ref.shape)


def _round_up(x, m):
    return (x + m - 1) // m * m


def _vmem_capacity_bytes():
    try:
        return int(pltpu.get_tpu_info().vmem_capacity_bytes)
    except Exception:
        return 64 * 1024 * 1024       # conservative (v7x-sized) fallback


def _choose_tiling(n, c, dtype_bytes, vmem_cap):
    """Generation-aware (block_n, block_c) for the logits tile."""
    if vmem_cap <= 64 * 1024 * 1024:          # v7x: 64 MiB VMEM, fast HBM
        tile_budget = 4 * 1024 * 1024
        max_rows = 4096
    else:                                      # v5e/v6e: 128 MiB VMEM, slower HBM
        tile_budget = 16 * 1024 * 1024
        max_rows = 8192

    n_pad = _round_up(n, 8)
    rows_full_c = (tile_budget // max(1, c * dtype_bytes)) // 8 * 8
    if rows_full_c >= 256 or rows_full_c >= n_pad:
        # Whole class dim in one block; rows limited only by the byte budget
        # (max_rows caps the lane-padded per-row target/scratch buffers).
        block_c = c
        block_n = int(min(n_pad, max_rows, max(8, rows_full_c)))
    else:
        # Very large C (face-rec style): tile classes (online logsumexp) so the
        # row dim / DMA efficiency and per-row scratch stay healthy.
        block_n = int(min(n_pad, 256))
        block_c = (tile_budget // (block_n * dtype_bytes)) // 128 * 128
        block_c = int(max(128, min(block_c, _round_up(c, 128))))
        if block_c >= c:
            block_c = c
    return block_n, block_c


def focal_loss(logits, target, *, gamma=0.0, eps=1e-7,
               block_rows=None, block_cols=None):
    """logits: [N, C] float (any float dtype), target: [N] int -> scalar f32 loss."""
    del eps   # matches the PyTorch module: eps is never used in forward()
    n, c = logits.shape
    dtype_bytes = jnp.dtype(logits.dtype).itemsize
    target2d = target.astype(jnp.int32).reshape(n, 1)

    vmem_cap = _vmem_capacity_bytes()
    auto_bn, auto_bc = _choose_tiling(n, c, dtype_bytes, vmem_cap)
    block_n = int(block_rows) if block_rows is not None else auto_bn
    block_c = int(block_cols) if block_cols is not None else auto_bc

    row_tiles = pl.cdiv(n, block_n)
    col_tiles = pl.cdiv(c, block_c)
    num_splits = 2 if row_tiles >= 2 else 1        # one split per v7x TensorCore
    tiles_per_split = pl.cdiv(row_tiles, num_splits)

    def _row_block(s, i):
        # Clamp a split's padded tail tile onto the last valid tile instead of
        # DMA-ing out of bounds; its rows are masked out inside the kernel.
        return jnp.minimum(s * tiles_per_split + i, row_tiles - 1)

    # Clamp the compiler's scoped-VMEM budget against the device's real capacity
    # (56 MiB on 64 MiB-VMEM v7x, 100 MiB on 128 MiB v5e/v6e).
    vmem_limit = int(max(32 * 1024 * 1024,
                         min(vmem_cap - 8 * 1024 * 1024, 100 * 1024 * 1024)))

    cost = pl.CostEstimate(
        flops=6 * n * c,                         # mask/select, max, sub passes per logit
        transcendentals=n * c,                   # one exp per logit
        bytes_accessed=n * c * dtype_bytes + n * 4 + num_splits * 8 * 128 * 4,
    )

    partials = pl.pallas_call(
        functools.partial(_focal_ce_kernel,
                          n_total=n, c_total=c,
                          block_n=block_n, block_c=block_c,
                          tiles_per_split=tiles_per_split),
        out_shape=jax.ShapeDtypeStruct((num_splits, 8, 128), jnp.float32),
        grid=(num_splits, tiles_per_split, col_tiles),
        in_specs=[
            pl.BlockSpec((block_n, block_c), lambda s, i, j: (_row_block(s, i), j)),
            pl.BlockSpec((block_n, 1), lambda s, i, j: (_row_block(s, i), 0)),
        ],
        out_specs=pl.BlockSpec((1, 8, 128), lambda s, i, j: (s, 0, 0)),
        scratch_shapes=[
            pltpu.VMEM((1, 1), jnp.float32),           # per-split CE partial sum
            pltpu.VMEM((block_n, 1), jnp.float32),     # running row max
            pltpu.VMEM((block_n, 1), jnp.float32),     # running row sum-exp
            pltpu.VMEM((block_n, 1), jnp.float32),     # running target logit
        ],
        compiler_params=pltpu.CompilerParams(
            # Split axis is core-parallel (both v7x TCs); row / class tiles are
            # serial reductions into resident scratch, hence "arbitrary".
            dimension_semantics=("parallel", "arbitrary", "arbitrary"),
            vmem_limit_bytes=vmem_limit,
        ),
        cost_estimate=cost,
    )(logits, target2d)      # logits travel over HBM in their original dtype

    logp = jnp.sum(partials[:, 0, 0]) / jnp.float32(n)   # mean CE (torch CrossEntropyLoss)
    if gamma == 0.0:
        return logp                                       # (1 - p)**0 == 1
    p = jnp.exp(-logp)
    return (1.0 - p) ** gamma * logp                      # scalar focal transform


def _focal_loss_ref(logits, target, *, gamma=0.0):
    # Pure-JAX reference matching torch.nn.CrossEntropyLoss + focal transform.
    logits = logits.astype(jnp.float32)
    logz = jax.nn.logsumexp(logits, axis=-1)
    tgt_logit = jnp.take_along_axis(
        logits, target[:, None].astype(jnp.int32), axis=-1)[:, 0]
    logp = jnp.mean(logz - tgt_logit)
    p = jnp.exp(-logp)
    return (1.0 - p) ** gamma * logp


if __name__ == "__main__":
    key = jax.random.PRNGKey(0)
    k1, k2, k3, k4 = jax.random.split(key, 4)

    # Small shapes consistent with the module: batch=8, classes=16.
    N, C = 8, 16
    logits = jax.random.normal(k1, (N, C), dtype=jnp.float32)
    target = jax.random.randint(k2, (N,), 0, C, dtype=jnp.int32)

    for gamma in (0.0, 2.0):      # module default gamma=0 plus a non-trivial gamma
        out = jax.block_until_ready(focal_loss(logits, target, gamma=gamma))
        ref = _focal_loss_ref(logits, target, gamma=gamma)
        assert jnp.allclose(out, ref, atol=1e-5, rtol=1e-5), (gamma, out, ref)

    # bf16 logits: transferred as bf16, upcast only inside the streamed exp/sum.
    logits_bf16 = logits.astype(jnp.bfloat16)
    out_bf16 = jax.block_until_ready(focal_loss(logits_bf16, target, gamma=2.0))
    ref_bf16 = _focal_loss_ref(logits_bf16.astype(jnp.float32), target, gamma=2.0)
    assert jnp.allclose(out_bf16, ref_bf16, atol=1e-3, rtol=1e-3), (out_bf16, ref_bf16)

    # Exercise the dual-split + class-tiled (online-logsumexp) path with padded
    # row and class tails: 3 row tiles over 2 splits, 2 class tiles over C=200.
    N2, C2 = 40, 200
    logits2 = jax.random.normal(k3, (N2, C2), dtype=jnp.float32)
    target2 = jax.random.randint(k4, (N2,), 0, C2, dtype=jnp.int32)
    out2 = jax.block_until_ready(
        focal_loss(logits2, target2, gamma=2.0, block_rows=16, block_cols=128))
    ref2 = _focal_loss_ref(logits2, target2, gamma=2.0)
    assert jnp.allclose(out2, ref2, atol=1e-5, rtol=1e-5), (out2, ref2)

    print("KERNEL_OK")
</pallas_src>

<mosaic_0001>
module attributes {stable_mosaic.version = 11 : i64} {
  func.func @_focal_ce_kernel(%arg0: i32, %arg1: i32, %arg2: i32, %arg3: memref<8x16xf32, #tpu.memory_space<vmem>>, %arg4: memref<8x1xi32, #tpu.memory_space<vmem>>, %arg5: memref<1x8x128xf32, #tpu.memory_space<vmem>>, %arg6: memref<1x1xf32, #tpu.memory_space<vmem>>, %arg7: memref<8x1xf32, #tpu.memory_space<vmem>>, %arg8: memref<8x1xf32, #tpu.memory_space<vmem>>, %arg9: memref<8x1xf32, #tpu.memory_space<vmem>>) attributes {dimension_semantics = [#tpu.dimension_semantics<parallel>, #tpu.dimension_semantics<arbitrary>, #tpu.dimension_semantics<arbitrary>], iteration_bounds = array<i64: 1, 1, 1>, scalar_prefetch = 0 : i64, scratch_operands = 4 : i64, tpu.core_type = #tpu.core_type<tc>, window_params = [{transform_indices = @transform_0, window_bounds = array<i64: 8, 16>}, {transform_indices = @transform_1, window_bounds = array<i64: 8, 1>}, {transform_indices = @transform_2, window_bounds = array<i64: 1, 8, 128>}]} {
    %c0_i32 = arith.constant 0 : i32
    %0 = arith.cmpi eq, %arg1, %c0_i32 : i32
    %c0_i32_0 = arith.constant 0 : i32
    %1 = arith.cmpi eq, %arg2, %c0_i32_0 : i32
    %2 = arith.andi %0, %1 : i1
    %3 = arith.extui %2 : i1 to i32
    %c0_i32_1 = arith.constant 0 : i32
    %4 = arith.cmpi ne, %3, %c0_i32_1 : i32
    scf.if %4 {
      %cst_27 = arith.constant 0.000000e+00 : f32
      %47 = vector.broadcast %cst_27 : f32 to vector<1x1xf32>
      %c0_28 = arith.constant 0 : index
      %c0_29 = arith.constant 0 : index
      %48 = vector.load %arg6[%c0_28, %c0_29] : memref<1x1xf32, #tpu.memory_space<vmem>>, vector<1x1xf32>
      tpu.vector_store %arg6[%c0_28, %c0_29], %47 {strides = array<i32>} : memref<1x1xf32, #tpu.memory_space<vmem>>, vector<1x1xf32>,
    } else {
    }
    %c0_i32_2 = arith.constant 0 : i32
    %5 = arith.cmpi eq, %arg2, %c0_i32_2 : i32
    %6 = arith.extui %5 : i1 to i32
    %c0_i32_3 = arith.constant 0 : i32
    %7 = arith.cmpi ne, %6, %c0_i32_3 : i32
    scf.if %7 {
      %cst_27 = arith.constant 0xFF800000 : f32
      %47 = vector.broadcast %cst_27 : f32 to vector<8x1xf32>
      %c0_28 = arith.constant 0 : index
      %c0_29 = arith.constant 0 : index
      %48 = vector.load %arg7[%c0_28, %c0_29] : memref<8x1xf32, #tpu.memory_space<vmem>>, vector<8x1xf32>
      tpu.vector_store %arg7[%c0_28, %c0_29], %47 {strides = array<i32>} : memref<8x1xf32, #tpu.memory_space<vmem>>, vector<8x1xf32>,
      %cst_30 = arith.constant 0.000000e+00 : f32
      %49 = vector.broadcast %cst_30 : f32 to vector<8x1xf32>
      %c0_31 = arith.constant 0 : index
      %c0_32 = arith.constant 0 : index
      %50 = vector.load %arg8[%c0_31, %c0_32] : memref<8x1xf32, #tpu.memory_space<vmem>>, vector<8x1xf32>
      tpu.vector_store %arg8[%c0_31, %c0_32], %49 {strides = array<i32>} : memref<8x1xf32, #tpu.memory_space<vmem>>, vector<8x1xf32>,
      %cst_33 = arith.constant 0.000000e+00 : f32
      %51 = vector.broadcast %cst_33 : f32 to vector<8x1xf32>
      %c0_34 = arith.constant 0 : index
      %c0_35 = arith.constant 0 : index
      %52 = vector.load %arg9[%c0_34, %c0_35] : memref<8x1xf32, #tpu.memory_space<vmem>>, vector<8x1xf32>
      tpu.vector_store %arg9[%c0_34, %c0_35], %51 {strides = array<i32>} : memref<8x1xf32, #tpu.memory_space<vmem>>, vector<8x1xf32>,
    } else {
    }
    %c0 = arith.constant 0 : index
    %c0_4 = arith.constant 0 : index
    %8 = vector.load %arg3[%c0, %c0_4] : memref<8x16xf32, #tpu.memory_space<vmem>>, vector<8x16xf32>
    %c0_5 = arith.constant 0 : index
    %c0_6 = arith.constant 0 : index
    %9 = vector.load %arg4[%c0_5, %c0_6] : memref<8x1xi32, #tpu.memory_space<vmem>>, vector<8x1xi32>
    %c16_i32 = arith.constant 16 : i32
    %10 = arith.muli %arg2, %c16_i32 : i32
    %11 = tpu.iota {dimensions = array<i32: 1>} : vector<8x16xi32>
    %12 = vector.broadcast %10 : i32 to vector<8x16xi32>
    %13 = arith.addi %12, %11 : vector<8x16xi32>
    %c0_7 = arith.constant 0 : index
    %c0_8 = arith.constant 0 : index
    %14 = vector.load %arg9[%c0_7, %c0_8] : memref<8x1xf32, #tpu.memory_space<vmem>>, vector<8x1xf32>
    %15 = vector.broadcast %9 : vector<8x1xi32> to vector<8x16xi32>
    %16 = arith.cmpi eq, %13, %15 : vector<8x16xi32>
    %cst = arith.constant 0.000000e+00 : f32
    %17 = vector.broadcast %cst : f32 to vector<8x16xf32>
    %18 = arith.select %16, %8, %17 : vector<8x16xi1>, vector<8x16xf32>
    %cst_9 = arith.constant dense<0.000000e+00> : vector<8xf32>
    %19 = vector.multi_reduction <add>, %18, %cst_9 [1] : vector<8x16xf32> to vector<8xf32>
    %20 = vector.shape_cast %19 : vector<8xf32> to vector<8x1xf32>
    %21 = arith.addf %14, %20 : vector<8x1xf32>
    %c0_10 = arith.constant 0 : index
    %c0_11 = arith.constant 0 : index
    %22 = vector.load %arg9[%c0_10, %c0_11] : memref<8x1xf32, #tpu.memory_space<vmem>>, vector<8x1xf32>
    tpu.vector_store %arg9[%c0_10, %c0_11], %21 {strides = array<i32>} : memref<8x1xf32, #tpu.memory_space<vmem>>, vector<8x1xf32>,
    %cst_12 = arith.constant dense<0xFF800000> : vector<8xf32>
    %23 = vector.multi_reduction <maximumf>, %8, %cst_12 [1] : vector<8x16xf32> to vector<8xf32>
    %24 = vector.shape_cast %23 : vector<8xf32> to vector<8x1xf32>
    %c0_13 = arith.constant 0 : index
    %c0_14 = arith.constant 0 : index
    %25 = vector.load %arg7[%c0_13, %c0_14] : memref<8x1xf32, #tpu.memory_space<vmem>>, vector<8x1xf32>
    %26 = arith.maximumf %25, %24 : vector<8x1xf32>
    %27 = vector.broadcast %26 : vector<8x1xf32> to vector<8x16xf32>
    %28 = arith.subf %8, %27 : vector<8x16xf32>
    %29 = math.exp %28 : vector<8x16xf32>
    %cst_15 = arith.constant dense<0.000000e+00> : vector<8xf32>
    %30 = vector.multi_reduction <add>, %29, %cst_15 [1] : vector<8x16xf32> to vector<8xf32>
    %31 = vector.shape_cast %30 : vector<8xf32> to vector<8x1xf32>
    %c0_16 = arith.constant 0 : index
    %c0_17 = arith.constant 0 : index
    %32 = vector.load %arg8[%c0_16, %c0_17] : memref<8x1xf32, #tpu.memory_space<vmem>>, vector<8x1xf32>
    %33 = arith.subf %25, %26 : vector<8x1xf32>
    %34 = math.exp %33 : vector<8x1xf32>
    %35 = arith.mulf %32, %34 : vector<8x1xf32>
    %36 = arith.addf %35, %31 : vector<8x1xf32>
    %c0_18 = arith.constant 0 : index
    %c0_19 = arith.constant 0 : index
    %37 = vector.load %arg8[%c0_18, %c0_19] : memref<8x1xf32, #tpu.memory_space<vmem>>, vector<8x1xf32>
    tpu.vector_store %arg8[%c0_18, %c0_19], %36 {strides = array<i32>} : memref<8x1xf32, #tpu.memory_space<vmem>>, vector<8x1xf32>,
    %c0_20 = arith.constant 0 : index
    %c0_21 = arith.constant 0 : index
    %38 = vector.load %arg7[%c0_20, %c0_21] : memref<8x1xf32, #tpu.memory_space<vmem>>, vector<8x1xf32>
    tpu.vector_store %arg7[%c0_20, %c0_21], %26 {strides = array<i32>} : memref<8x1xf32, #tpu.memory_space<vmem>>, vector<8x1xf32>,
    %c0_i32_22 = arith.constant 0 : i32
    %39 = arith.cmpi eq, %arg2, %c0_i32_22 : i32
    %40 = arith.extui %39 : i1 to i32
    %c0_i32_23 = arith.constant 0 : i32
    %41 = arith.cmpi ne, %40, %c0_i32_23 : i32
    scf.if %41 {
      %c0_27 = arith.constant 0 : index
      %c0_28 = arith.constant 0 : index
      %47 = vector.load %arg7[%c0_27, %c0_28] : memref<8x1xf32, #tpu.memory_space<vmem>>, vector<8x1xf32>
      %c0_29 = arith.constant 0 : index
      %c0_30 = arith.constant 0 : index
      %48 = vector.load %arg8[%c0_29, %c0_30] : memref<8x1xf32, #tpu.memory_space<vmem>>, vector<8x1xf32>
      %49 = math.log %48 : vector<8x1xf32>
      %50 = arith.addf %47, %49 : vector<8x1xf32>
      %c0_31 = arith.constant 0 : index
      %c0_32 = arith.constant 0 : index
      %51 = vector.load %arg9[%c0_31, %c0_32] : memref<8x1xf32, #tpu.memory_space<vmem>>, vector<8x1xf32>
      %52 = arith.subf %50, %51 : vector<8x1xf32>
      %c1_i32 = arith.constant 1 : i32
      %53 = arith.muli %arg0, %c1_i32 : i32
      %54 = arith.addi %53, %arg1 : i32
      %c8_i32 = arith.constant 8 : i32
      %55 = arith.muli %54, %c8_i32 : i32
      %56 = tpu.iota {dimensions = array<i32: 0>} : vector<8x1xi32>
      %57 = vector.broadcast %55 : i32 to vector<8x1xi32>
      %58 = arith.addi %57, %56 : vector<8x1xi32>
      %c8_i32_33 = arith.constant 8 : i32
      %59 = vector.broadcast %c8_i32_33 : i32 to vector<8x1xi32>
      %60 = arith.cmpi slt, %58, %59 : vector<8x1xi32>
      %cst_34 = arith.constant 0.000000e+00 : f32
      %61 = vector.broadcast %cst_34 : f32 to vector<8x1xf32>
      %62 = arith.select %60, %52, %61 : vector<8x1xi1>, vector<8x1xf32>
      %c0_35 = arith.constant 0 : index
      %c0_36 = arith.constant 0 : index
      %63 = vector.load %arg6[%c0_35, %c0_36] : memref<1x1xf32, #tpu.memory_space<vmem>>, vector<1x1xf32>
      %cst_37 = arith.constant dense<0.000000e+00> : vector<1xf32>
      %64 = vector.multi_reduction <add>, %62, %cst_37 [0] : vector<8x1xf32> to vector<1xf32>
      %65 = vector.shape_cast %64 : vector<1xf32> to vector<1x1xf32>
      %66 = arith.addf %63, %65 : vector<1x1xf32>
      %c0_38 = arith.constant 0 : index
      %c0_39 = arith.constant 0 : index
      %67 = vector.load %arg6[%c0_38, %c0_39] : memref<1x1xf32, #tpu.memory_space<vmem>>, vector<1x1xf32>
      tpu.vector_store %arg6[%c0_38, %c0_39], %66 {strides = array<i32>} : memref<1x1xf32, #tpu.memory_space<vmem>>, vector<1x1xf32>,
    } else {
    }
    %c0_i32_24 = arith.constant 0 : i32
    %42 = arith.cmpi eq, %arg1, %c0_i32_24 : i32
    %c0_i32_25 = arith.constant 0 : i32
    %43 = arith.cmpi eq, %arg2, %c0_i32_25 : i32
    %44 = arith.andi %42, %43 : i1
    %45 = arith.extui %44 : i1 to i32
    %c0_i32_26 = arith.constant 0 : i32
    %46 = arith.cmpi ne, %45, %c0_i32_26 : i32
    scf.if %46 {
      %c0_27 = arith.constant 0 : index
      %c0_28 = arith.constant 0 : index
      %47 = vector.load %arg6[%c0_27, %c0_28] : memref<1x1xf32, #tpu.memory_space<vmem>>, vector<1x1xf32>
      %48 = vector.shape_cast %47 : vector<1x1xf32> to vector<1x1x1xf32>
      %49 = vector.shape_cast %48 : vector<1x1x1xf32> to vector<1x1x1xf32>
      %50 = vector.broadcast %49 : vector<1x1x1xf32> to vector<1x8x128xf32>
      %c0_29 = arith.constant 0 : index
      %c0_30 = arith.constant 0 : index
      %c0_31 = arith.constant 0 : index
      %51 = vector.load %arg5[%c0_29, %c0_30, %c0_31] : memref<1x8x128xf32, #tpu.memory_space<vmem>>, vector<1x8x128xf32>
      tpu.vector_store %arg5[%c0_29, %c0_30, %c0_31], %50 {strides = array<i32>} : memref<1x8x128xf32, #tpu.memory_space<vmem>>, vector<1x8x128xf32>,
    } else {
    }
    return
  }
  func.func @transform_0(%arg0: i32, %arg1: i32, %arg2: i32) -> (i32, i32) {
    %c1_i32 = arith.constant 1 : i32
    %0 = arith.muli %arg0, %c1_i32 : i32
    %1 = arith.addi %0, %arg1 : i32
    %c0_i32 = arith.constant 0 : i32
    %2 = arith.minsi %1, %c0_i32 : i32
    %c0_i32_0 = arith.constant 0 : i32
    return %2, %arg2 : i32, i32
  }
  func.func @transform_1(%arg0: i32, %arg1: i32, %arg2: i32) -> (i32, i32) {
    %c1_i32 = arith.constant 1 : i32
    %0 = arith.muli %arg0, %c1_i32 : i32
    %1 = arith.addi %0, %arg1 : i32
    %c0_i32 = arith.constant 0 : i32
    %2 = arith.minsi %1, %c0_i32 : i32
    %c0_i32_0 = arith.constant 0 : i32
    %c0_i32_1 = arith.constant 0 : i32
    return %2, %c0_i32_0 : i32, i32
  }
  func.func @transform_2(%arg0: i32, %arg1: i32, %arg2: i32) -> (i32, i32, i32) {
    %c0_i32 = arith.constant 0 : i32
    %c0_i32_0 = arith.constant 0 : i32
    %c0_i32_1 = arith.constant 0 : i32
    return %arg0, %c0_i32, %c0_i32_0 : i32, i32, i32
  }
}

</mosaic_0001>

<llo_original>
// kernel: tpu_custom_call.1
$region0: #{tpu_custom_call.1}
  #allocation0 [shape = 'u32[]', space=smem, size = 0x4, offset = 0x4, fixed_abs, tag = 'smem constant byte address 0x4 - core index']
  #allocation1 [shape = 'u32[144,128]{1,0:T(1,128)}', space=vmem, size = 0x12000, scoped, tag = 'internal scratch']
  #allocation2 [shape = 'f32[1,1]{1,0:T(1,128)}', space=vmem, size = 0x200, scoped, tag = 'scratch operand']
  #allocation3 [shape = 'f32[8,1]{1,0:T(8,128)}', space=vmem, size = 0x1000, scoped, tag = 'scratch operand']
  #allocation4 [shape = 'f32[8,1]{1,0:T(8,128)}', space=vmem, size = 0x1000, scoped, tag = 'scratch operand']
  #allocation5 [shape = 'f32[8,1]{1,0:T(8,128)}', space=vmem, size = 0x1000, scoped, tag = 'scratch operand']
  %s0 = inlined_call_operand.vmem [shape: f32[8,16], index: 0, kind: input, shape index: {}]
  %s1 = inlined_call_operand.vmem [shape: s32[8,1], index: 1, kind: input, shape index: {}]
  %s2 = inlined_call_operand.hbm [shape: f32[1,8,128], index: 2, kind: output, shape index: {}]
  %s3 = sld [smem:[#allocation0]]
  $region34: #{tpu_custom_call.1} parent=0
    _
  %s5 = ssub.s32 1, %s3
  %s6 = scalar_select 0, %s5, %s3
  $region1: #{tpu_custom_call.1} parent=0
    #allocation6 [shape = 'u8[4096]{0}', space=vmem, size = 0x1000, scoped, tag = 'output window, operand 0, single buffered']
    #allocation7 [shape = 's32[1]{0}', space=sflag, size = 0x4, scoped, tag = 'scoped memory for tpu_custom_call.1']
    %7 = vsyncpa [#allocation7], 0
    // Predicated region
    $region2: #{tpu_custom_call.1} parent=1 // pred_check
      _
    $region3: #{tpu_custom_call.1} parent=1 // pred_check_branch
      %9 = sbr.rel (0) target = $region5
    $region4: #{tpu_custom_call.1} parent=1 // pred_region
      %s10 = sadd.s32 0, 0
      %p11 = scmp.lt.s32.totalorder %s10, 0
      %s12 = scalar_select %p11, %s10, 0
      %p13 = scmp.lt.s32.totalorder %s12, 0
      %s14 = scalar_select %p13, %s12, 0
      %s15 = smul.addr %s14, 8
      %s16 = scalar_lea.vmem %s0, %s15
      %s17 = sadd.s32 0, 0
      %p18 = scmp.lt.s32.totalorder %s17, 0
      %s19 = scalar_select %p18, %s17, 0
    $region5: #{tpu_custom_call.1} parent=1 // pred_fallthru
      _
    // Predicated region
    $region6: #{tpu_custom_call.1} parent=1 // pred_check
      _
    $region7: #{tpu_custom_call.1} parent=1 // pred_check_branch
      %21 = sbr.rel (0) target = $region9
    $region8: #{tpu_custom_call.1} parent=1 // pred_region
      %s22 = sadd.s32 0, 0
      %p23 = scmp.lt.s32.totalorder %s22, 0
      %s24 = scalar_select %p23, %s22, 0
      %p25 = scmp.lt.s32.totalorder %s24, 0
      %s26 = scalar_select %p25, %s24, 0
      %s27 = smul.addr %s26, 8
      %s28 = scalar_lea.vmem %s1, %s27
      %s29 = sadd.s32 0, 0
      %p30 = scmp.lt.s32.totalorder %s29, 0
      %s31 = scalar_select %p30, %s29, 0
    $region9: #{tpu_custom_call.1} parent=1 // pred_fallthru
      _
    %s32 = sadd.s32 0, 0
    %p33 = scmp.lt.s32.totalorder %s32, 0
    %s34 = scalar_select %p33, %s32, 0
    %p35 = scmp.lt.s32.totalorder %s34, 0
    %s36 = scalar_select %p35, %s34, 0
    %s37 = smul.addr %s36, 8
    %s38 = scalar_lea.vmem %s0, %s37
    %s39 = sadd.s32 0, 0
    %p40 = scmp.lt.s32.totalorder %s39, 0
    %s41 = scalar_select %p40, %s39, 0
    %p42 = scmp.lt.s32.totalorder %s41, 0
    %s43 = scalar_select %p42, %s41, 0
    %s44 = smul.addr %s43, 8
    %s45 = scalar_lea.vmem %s1, %s44
    %s46 = sadd.s32 0, 0
    %p47 = scmp.lt.s32.totalorder %s46, 0
    %s48 = scalar_select %p47, %s46, 0
    %p49 = scmp.lt.s32.totalorder %s48, 0
    %s50 = scalar_select %p49, %s48, 0
    %s51 = smul.addr %s50, 8
    %s52 = scalar_lea.vmem %s0, %s51
    %s53 = sadd.s32 0, 0
    %p54 = scmp.lt.s32.totalorder %s53, 0
    %s55 = scalar_select %p54, %s53, 0
    %s56 = sadd.s32 0, 0
    %p57 = scmp.lt.s32.totalorder %s56, 0
    %s58 = scalar_select %p57, %s56, 0
    %p59 = scmp.lt.s32.totalorder %s58, 0
    %s60 = scalar_select %p59, %s58, 0
    %s61 = smul.addr %s60, 8
    %s62 = scalar_lea.vmem %s1, %s61
    %s63 = sadd.s32 0, 0
    %p64 = scmp.lt.s32.totalorder %s63, 0
    %s65 = scalar_select %p64, %s63, 0
    %p66 = scmp.eq.s32.totalorder 0, 0
    %p67 = scmp.eq.s32.totalorder 0, 0
    %p68 = pnand %p66, %p67
    %p69 = pneg %p68
    // Predicated region
    $region10: #{tpu_custom_call.1} parent=1 // pred_check
      _
    $region11: #{tpu_custom_call.1} parent=1 // pred_check_branch
      %71 = sbr.rel (%p68) target = $region13
    $region12: #{tpu_custom_call.1} parent=1 // pred_region
      %vm72 = vcmask 0
      %73 = vst.msk [vmem:[#allocation2] sm:$0x1] %vm72, 0.0
    $region13: #{tpu_custom_call.1} parent=1 // pred_fallthru
      _
    // Predicated region
    $region14: #{tpu_custom_call.1} parent=1 // pred_check
      %p74 = pneg %p67
    $region15: #{tpu_custom_call.1} parent=1 // pred_check_branch
      %76 = sbr.rel (%p74) target = $region17
    $region16: #{tpu_custom_call.1} parent=1 // pred_region
      %vm77 = vcmask 7168
      %78 = vst.msk [vmem:[#allocation3] sm:$0xff] %vm77, -inf
      %79 = vst.msk [vmem:[#allocation4] sm:$0xff] %vm77, 0.0
      %80 = vst.msk [vmem:[#allocation5] sm:$0xff] %vm77, 0.0
    $region17: #{tpu_custom_call.1} parent=1 // pred_fallthru
      _
    %v81 = vld [vmem:[%s52] sm:$0xff]
    %v82 = vld [vmem:[%s62] sm:$0xff]
    %s83 = smul.u32 0, 16
    %v84 = vlaneseq
    %v85 = vand.u32 %v84, 127
    %v86 = vstv %s83
    %v87 = vadd.s32 %v86, %v85
    %v88 = vld [vmem:[#allocation5] sm:$0xff]
    %89 = vset.pattern.permute.xlu0 0
    %90 = vperm.xlu0 %89, %v82
    %v91 = vpop.permute.xlu0 %90
    %vm92 = vcmp.eq.s32.totalorder %v87, %v91
    %v93 = vsel %vm92, %v81, 0.0
    %vm94 = vcmask 130048
    %v95 = vsel %vm94, %v93, 0.0
    %96 = vadd.xlane.f32.xlu0 %v95
    %v97 = vpop.xlane.xlu0 %96
    %v98 = vadd.f32 %v88, %v97
    %vm99 = vcmask 7168
    %100 = vst.msk [vmem:[#allocation5] sm:$0xff] %vm99, %v98
    %v101 = vsel %vm94, %v81, -inf
    %102 = vmax.xlane.f32.xlu0 %v101
    %v103 = vpop.xlane.xlu0 %102
    %v104 = vld [vmem:[#allocation3] sm:$0xff]
    %v105 = vmax.f32 %v104, %v103
    %107 = vset.pattern.permute.xlu0 0
    %108 = vperm.xlu0 %107, %v105
    %v109 = vpop.permute.xlu0 %108
    %v111 = vsub.f32 %v81, %v109
    %v112 = vmul.f32 %v111, 1.442695
    %v113 = vpow.pop %v112
    %v114 = vsel %vm94, %v113, 0.0
    %115 = vadd.xlane.f32.xlu0 %v114
    %v116 = vpop.xlane.xlu0 %115
    %v117 = vld [vmem:[#allocation4] sm:$0xff]
    %v118 = vsub.f32 %v104, %v105
    %v119 = vmul.f32 %v118, 1.442695
    %v120 = vpow.pop %v119
    %v121 = vmul.f32 %v117, %v120
    %v122 = vadd.f32 %v121, %v116
    %123 = vst.msk [vmem:[#allocation4] sm:$0xff] %vm99, %v122
    %124 = vst.msk [vmem:[#allocation3] sm:$0xff] %vm99, %v105
    // Predicated region
    $region18: #{tpu_custom_call.1} parent=1 // pred_check
      %p125 = pneg %p67
    $region19: #{tpu_custom_call.1} parent=1 // pred_check_branch
      %127 = sbr.rel (%p125) target = $region21
    $region20: #{tpu_custom_call.1} parent=1 // pred_region
      %v128 = vld [vmem:[#allocation3] sm:$0xff]
      %v129 = vld [vmem:[#allocation4] sm:$0xff]
      %v130 = vlog2.pop %v129
      %v131 = vmul.f32 %v130, 0.6931472
      %v132 = vadd.f32 %v128, %v131
      %v133 = vld [vmem:[#allocation5] sm:$0xff]
      %v134 = vsub.f32 %v132, %v133
      %s135 = sadd.s32 0, 0
      %s136 = smul.u32 %s135, 8
      %v137 = vlaneseq
      %v138 = vshrl.u32 %v137, 7
      %v139 = vstv %s136
      %v140 = vadd.s32 %v139, %v138
      %vm141 = vcmp.lt.s32.totalorder %v140, 8
      %v142 = vsel %vm141, %v134, 0.0
      %v143 = vld [vmem:[#allocation2] sm:$0x1]
      %v144 = vsel %vm99, %v142, 0.0
      %v145 = vrot.slane %v144, 4
      %v146 = vadd.f32 %v144, %v145
      %v147 = vrot.slane %v146, 2
      %v148 = vadd.f32 %v146, %v147
      %v149 = vrot.slane %v148, 1
      %v150 = vadd.f32 %v148, %v149
      %v151 = vadd.f32 %v143, %v150
      %vm152 = vcmask 0
      %153 = vst.msk [vmem:[#allocation2] sm:$0x1] %vm152, %v151
    $region21: #{tpu_custom_call.1} parent=1 // pred_fallthru
      _
    // Predicated region
    $region22: #{tpu_custom_call.1} parent=1 // pred_check
      _
    $region23: #{tpu_custom_call.1} parent=1 // pred_check_branch
      %155 = sbr.rel (%p68) target = $region25
    $region24: #{tpu_custom_call.1} parent=1 // pred_region
      %v156 = vld [vmem:[#allocation2] sm:$0x1]
      %v158 = vlaneseq
      %v159 = vshrl.u32 %v158, 7
      %v160 = vsub.s32 0, %v159
      %v161 = vrot.slane %v156, %v160
      %162 = vset.pattern.permute.xlu0 0
      %163 = vperm.xlu0 %162, %v161
      %v164 = vpop.permute.xlu0 %163
      %166 = vst [vmem:[#allocation6] sm:$0xff] %v164
    $region25: #{tpu_custom_call.1} parent=1 // pred_fallthru
      _
    // Predicated region
    $region26: #{tpu_custom_call.1} parent=1 // pred_check
      _
    $region27: #{tpu_custom_call.1} parent=1 // pred_check_branch
      %168 = sbr.rel (0) target = $region29
    $region28: #{tpu_custom_call.1} parent=1 // pred_region
      %s170 = ssub.s32 128, 128
      %171 = vsyncadd [#allocation7], %s170
      %s173 = sshll.u32 [#allocation6], 4
      %s174 = int_to_ptr.vmem [resolvable:$true] %s173
      %176 = dma.vmem_to_hbm [thread:$0]  %s174, 128, %s2, [#allocation7]
    $region29: #{tpu_custom_call.1} parent=1 // pred_fallthru
      _
    // Predicated region
    $region30: #{tpu_custom_call.1} parent=1 // pred_check
      _
    $region31: #{tpu_custom_call.1} parent=1 // pred_check_branch
      %178 = sbr.rel (0) target = $region33
    $region32: #{tpu_custom_call.1} parent=1 // pred_region
      %179 = dma.done [#allocation7], 128
    $region33: #{tpu_custom_call.1} parent=1 // pred_fallthru
      _
    %180 = vsyncpa [#allocation7], 1

</llo_original>
